<compile_context>
chip_gen: v7x
topology: tpu7x:2x2x1
jax: 0.10.0
libtpu: 0.0.40
codegen_flags: <defaults>
</compile_context>

<pallas_src>
import functools

import jax
import jax.numpy as jnp
from jax.experimental import pallas as pl
from jax.experimental.pallas import tpu as pltpu


# ----------------------------------------------------------------------------
# Fused kernel: block-diag 1x1 conv -> ReLU -> (scale) -> shift -> upsample
# ----------------------------------------------------------------------------
def fused_kernel(x_ref, w_ref, p_ref, bt_ref, o_ref, *, apply_scale):
    # x_ref : (GB*C_in,  HW_in)   stacked activations of GB (image, branch) slabs
    # w_ref : (GB*C_out, GB*C_in) block-diagonal BN-folded 1x1-conv weight
    # p_ref : (GB*C_out, 3)       packed per-row params [bias | s2 | t2]
    # bt_ref: (HW_in, HW_out)     kron(A_h, A_w)^T bilinear interpolation matrix
    # o_ref : (GB*C_out, HW_out)  lane-dense output slab

    # 1x1 conv of every slab in one small MXU matmul (M = GB*C_out rows).
    y = jnp.dot(w_ref[...], x_ref[...], preferred_element_type=jnp.float32)
    y = jnp.maximum(y + p_ref[:, 0:1], 0.0)        # conv bias (BN1-folded) + ReLU
    if apply_scale:                                # only when BN2 scale could NOT be
        y = y * p_ref[:, 1:2]                      # folded (some s2 <= 0)
    y = y + p_ref[:, 2:3]                          # BN2 shift, applied pre-upsample
                                                   # (HW_in lanes; bilinear rows sum to 1)

    # Bilinear upsample of ALL rows in one MXU matmul; (GB*C_out, HW_out) output
    # is lane-dense (HW_out multiple of 128) -> unmasked stores.
    o_ref[...] = jnp.dot(y, bt_ref[...], preferred_element_type=jnp.float32)


def deconv_fused_pallas(xs, w_blk, p_slab, bt, *, num_blocks, apply_scale):
    """xs: (G*C_in, HW_in) -> (G*C_out, HW_out), in `num_blocks` grid steps."""
    r_in, hw_in = xs.shape
    rb_in = r_in // num_blocks
    rb_out = p_slab.shape[0]                 # GB * C_out rows per grid step
    r_out = rb_out * num_blocks
    hw_out = bt.shape[1]
    const = dict(pipeline_mode=pl.Buffered(1))   # grid-constant operands: single-buffer
    return pl.pallas_call(
        functools.partial(fused_kernel, apply_scale=apply_scale),
        out_shape=jax.ShapeDtypeStruct((r_out, hw_out), jnp.float32),
        grid=(num_blocks,),
        in_specs=[
            pl.BlockSpec((rb_in, hw_in), lambda i: (i, 0)),
            pl.BlockSpec(w_blk.shape, lambda i: (0, 0), **const),
            pl.BlockSpec(p_slab.shape, lambda i: (0, 0), **const),
            pl.BlockSpec(bt.shape, lambda i: (0, 0), **const),
        ],
        out_specs=pl.BlockSpec((rb_out, hw_out), lambda i: (i, 0)),
        compiler_params=pltpu.CompilerParams(
            dimension_semantics=("parallel",),   # 2-TC chips split the two steps
        ),
    )(xs, w_blk, p_slab, bt)


# ----------------------------------------------------------------------------
# Glue: interpolation matrices, parameter folding, forward
# ----------------------------------------------------------------------------
def bilinear_matrix(out_size, in_size):
    """(out_size, in_size) interpolation matrix, align_corners=True, scatter-free."""
    if out_size == 1 or in_size == 1:
        src = jnp.zeros((out_size,), jnp.float32)
    else:
        src = jnp.arange(out_size, dtype=jnp.float32) * ((in_size - 1) / (out_size - 1))
    i0 = jnp.clip(jnp.floor(src), 0.0, in_size - 1)
    i1 = jnp.minimum(i0 + 1.0, in_size - 1)
    w1 = src - i0
    w0 = 1.0 - w1
    cols = jnp.arange(in_size, dtype=jnp.float32)[None, :]
    a = (w0[:, None] * (cols == i0[:, None]).astype(jnp.float32)
         + w1[:, None] * (cols == i1[:, None]).astype(jnp.float32))
    return a


def init_raw_params(key, input_channels, num_classes):
    ks = jax.random.split(key, 4)
    # BatchNorm2d(input_channels), inference mode
    g1 = 1.0 + 0.1 * jax.random.normal(ks[0], (input_channels,), jnp.float32)
    b1 = 0.1 * jax.random.normal(ks[1], (input_channels,), jnp.float32)
    rm1 = 0.05 * jnp.arange(input_channels, dtype=jnp.float32)
    rv1 = 1.0 + 0.02 * jnp.arange(input_channels, dtype=jnp.float32)
    # Conv2d(input_channels, num_classes, kernel_size=1)
    w = 0.3 * jax.random.normal(ks[2], (num_classes, input_channels), jnp.float32)
    b = 0.1 * jax.random.normal(ks[3], (num_classes,), jnp.float32)
    # BatchNorm2d(num_classes), inference mode
    g2 = 1.0 + 0.05 * jnp.arange(num_classes, dtype=jnp.float32)
    b2 = 0.02 * jnp.arange(num_classes, dtype=jnp.float32)
    rm2 = 0.03 * jnp.arange(num_classes, dtype=jnp.float32)
    rv2 = 1.0 + 0.01 * jnp.arange(num_classes, dtype=jnp.float32)
    return dict(g1=g1, b1=b1, rm1=rm1, rv1=rv1, w=w, b=b,
                g2=g2, b2=b2, rm2=rm2, rv2=rv2)


def fold_params(raw, eps=1e-5):
    """Fold BN1 (always) and BN2's scale (when all s2 > 0) into the 1x1 conv.

    Returns (kernel_params, apply_scale); apply_scale=True means BN2's scale
    could not be folded (ReLU does not commute with negative scales) and the
    kernel applies it after the ReLU instead."""
    s1 = raw["g1"] * jax.lax.rsqrt(raw["rv1"] + eps)
    t1 = raw["b1"] - raw["rm1"] * s1
    w1 = raw["w"] * s1[None, :]                 # (C_out, C_in)
    b1 = raw["b"] + raw["w"] @ t1               # (C_out,)
    s2 = raw["g2"] * jax.lax.rsqrt(raw["rv2"] + eps)
    t2 = raw["b2"] - raw["rm2"] * s2
    can_fold = bool(jnp.all(s2 > 0.0))          # concrete (not under jit)
    if can_fold:
        w_eff, b_eff, s_eff = w1 * s2[:, None], b1 * s2, jnp.ones_like(s2)
    else:
        w_eff, b_eff, s_eff = w1, b1, s2
    return dict(w_eff=w_eff, b_eff=b_eff, s_eff=s_eff, t_eff=t2), (not can_fold)


def pick_num_blocks(g, c_in, c_out):
    """2 grid steps only on 2-TensorCore chips (v7x / v4 / v5p); else 1."""
    try:
        kind = jax.devices()[0].device_kind.lower()
    except Exception:
        return 1
    two_core = ("7" in kind) or ("v4" in kind) or ("v5p" in kind)
    if not two_core or g % 2:
        return 1
    gb = g // 2
    # Per-step row counts must stay multiples of 8 (sublane tile) for BlockSpec.
    if (gb * c_in) % 8 or (gb * c_out) % 8:
        return 1
    return 2


@functools.partial(jax.jit, static_argnames=("out_size", "num_blocks", "apply_scale"))
def deconvolution_forward(x1, x2, params, out_size, num_blocks=1, apply_scale=False):
    N, C_in, H, W = x1.shape
    H_out, W_out = out_size
    C_out = params["w_eff"].shape[0]
    G = 2 * N
    GB = G // num_blocks                      # (image, branch) slabs per grid step

    # Combined separable interpolation matrix (constant-folded under jit).
    # TODO(synk): for large input_size switch to a separable two-pass (W then H)
    # upsample instead of this O(HW_in*HW_out) kron matrix to bound VMEM.
    a_h = bilinear_matrix(H_out, H)
    a_w = bilinear_matrix(W_out, W)
    bt = jnp.kron(a_h, a_w).T                 # (H*W, H_out*W_out)

    # Both branches joined with a cheap axis-0 concat (no interleave copy);
    # row order is (branch, image, channel) -> free reshape to 2-D.
    xs = jnp.concatenate([x1, x2], axis=0).reshape(G * C_in, H * W)

    # Block-diagonal conv weight: the 1x1 conv of all GB slabs of a grid step is
    # ONE small MXU matmul (M = GB*C_out), identical for every grid step.
    w_blk = jnp.kron(jnp.eye(GB, dtype=jnp.float32), params["w_eff"])
    # Per-row params packed into a single slab: [bias | s2 | t2].
    p_slab = jnp.tile(
        jnp.stack([params["b_eff"], params["s_eff"], params["t_eff"]], axis=1),
        (GB, 1))

    out2d = deconv_fused_pallas(xs, w_blk, p_slab, bt,
                                num_blocks=num_blocks, apply_scale=apply_scale)

    # Rows are (branch, image, channel); regroup to concat([b1, b2], dim=1).
    out = out2d.reshape(2, N, C_out, H_out, W_out)
    return out.transpose(1, 0, 2, 3, 4).reshape(N, 2 * C_out, H_out, W_out)


# Pure-JAX reference implementing the module directly from the RAW BN/conv
# parameters (no folding), so it also validates the folding algebra.
def reference_forward(x1, x2, raw, out_size, eps=1e-5):
    def bn(x, g, b, rm, rv):
        s = (g * jax.lax.rsqrt(rv + eps))[None, :, None, None]
        return (x - rm[None, :, None, None]) * s + b[None, :, None, None]

    a_h = bilinear_matrix(out_size[0], x1.shape[2])
    a_w = bilinear_matrix(out_size[1], x1.shape[3])

    def branch(x):
        x = bn(x, raw["g1"], raw["b1"], raw["rm1"], raw["rv1"])
        y = jnp.einsum("oc,nchw->nohw", raw["w"], x) + raw["b"][None, :, None, None]
        y = jnp.maximum(y, 0.0)
        y = bn(y, raw["g2"], raw["b2"], raw["rm2"], raw["rv2"])
        return jnp.einsum("oh,nchw,pw->ncop", a_h, y, a_w)

    return jnp.concatenate([branch(x1), branch(x2)], axis=1)


if __name__ == "__main__":
    key = jax.random.PRNGKey(0)
    k_x1, k_x2, k_p = jax.random.split(key, 3)

    N, C_in, H, W = 2, 4, 16, 16
    num_classes = 4
    input_size = (32, 32)  # UpsamplingBilinear2d target size

    x1 = jax.random.normal(k_x1, (N, C_in, H, W), jnp.float32)
    x2 = jax.random.normal(k_x2, (N, C_in, H, W), jnp.float32)

    raw = init_raw_params(k_p, C_in, num_classes)
    params, apply_scale = fold_params(raw)
    num_blocks = pick_num_blocks(2 * N, C_in, num_classes)

    out = deconvolution_forward(x1, x2, params, input_size,
                                num_blocks=num_blocks, apply_scale=apply_scale)
    out = jax.block_until_ready(out)

    assert out.shape == (N, 2 * num_classes, input_size[0], input_size[1]), out.shape
    ref = reference_forward(x1, x2, raw, input_size)
    err = float(jnp.max(jnp.abs(out - ref)))
    assert err < 1e-4, err

    print("KERNEL_OK")
</pallas_src>

<mosaic_0001>
module attributes {stable_mosaic.version = 11 : i64} {
  func.func @fused_kernel(%arg0: i32, %arg1: memref<16x256xf32, #tpu.memory_space<vmem>>, %arg2: memref<16x16xf32, #tpu.memory_space<vmem>>, %arg3: memref<16x3xf32, #tpu.memory_space<vmem>>, %arg4: memref<256x1024xf32, #tpu.memory_space<vmem>>, %arg5: memref<16x1024xf32, #tpu.memory_space<vmem>>) attributes {dimension_semantics = [#tpu.dimension_semantics<parallel>], iteration_bounds = array<i64: 1>, scalar_prefetch = 0 : i64, scratch_operands = 0 : i64, tpu.core_type = #tpu.core_type<tc>, window_params = [{transform_indices = @transform_0, window_bounds = array<i64: 16, 256>}, {pipeline_mode = #tpu.pipeline_mode<synchronous>, transform_indices = @transform_1, window_bounds = array<i64: 16, 16>}, {pipeline_mode = #tpu.pipeline_mode<synchronous>, transform_indices = @transform_2, window_bounds = array<i64: 16, 3>}, {pipeline_mode = #tpu.pipeline_mode<synchronous>, transform_indices = @transform_3, window_bounds = array<i64: 256, 1024>}, {transform_indices = @transform_4, window_bounds = array<i64: 16, 1024>}]} {
    %c0 = arith.constant 0 : index
    %c0_0 = arith.constant 0 : index
    %0 = vector.load %arg2[%c0, %c0_0] : memref<16x16xf32, #tpu.memory_space<vmem>>, vector<16x16xf32>
    %c0_1 = arith.constant 0 : index
    %c0_2 = arith.constant 0 : index
    %1 = vector.load %arg1[%c0_1, %c0_2] : memref<16x256xf32, #tpu.memory_space<vmem>>, vector<16x256xf32>
    %cst = arith.constant dense<0.000000e+00> : vector<16x256xf32>
    %2 = tpu.matmul %0, %1, %cst {dimension_numbers = #tpu.dot_dimension_numbers<[1], [0], [0], [1], [0, 0, 1, 1], [], []>} : vector<16x16xf32>, vector<16x256xf32>, vector<16x256xf32> -> vector<16x256xf32>
    %c0_3 = arith.constant 0 : index
    %c0_4 = arith.constant 0 : index
    %3 = vector.load %arg3[%c0_3, %c0_4] : memref<16x3xf32, #tpu.memory_space<vmem>>, vector<16x1xf32>
    %4 = vector.broadcast %3 : vector<16x1xf32> to vector<16x256xf32>
    %5 = arith.addf %2, %4 : vector<16x256xf32>
    %cst_5 = arith.constant 0.000000e+00 : f32
    %6 = vector.broadcast %cst_5 : f32 to vector<16x256xf32>
    %7 = arith.maximumf %5, %6 : vector<16x256xf32>
    %c0_6 = arith.constant 0 : index
    %c2 = arith.constant 2 : index
    %8 = vector.load %arg3[%c0_6, %c2] : memref<16x3xf32, #tpu.memory_space<vmem>>, vector<16x1xf32>
    %9 = vector.broadcast %8 : vector<16x1xf32> to vector<16x256xf32>
    %10 = arith.addf %7, %9 : vector<16x256xf32>
    %c0_7 = arith.constant 0 : index
    %c0_8 = arith.constant 0 : index
    %11 = vector.load %arg4[%c0_7, %c0_8] : memref<256x1024xf32, #tpu.memory_space<vmem>>, vector<256x1024xf32>
    %cst_9 = arith.constant dense<0.000000e+00> : vector<16x1024xf32>
    %12 = tpu.matmul %10, %11, %cst_9 {dimension_numbers = #tpu.dot_dimension_numbers<[1], [0], [0], [1], [0, 0, 1, 1], [], []>} : vector<16x256xf32>, vector<256x1024xf32>, vector<16x1024xf32> -> vector<16x1024xf32>
    %c0_10 = arith.constant 0 : index
    %c0_11 = arith.constant 0 : index
    %13 = vector.load %arg5[%c0_10, %c0_11] : memref<16x1024xf32, #tpu.memory_space<vmem>>, vector<16x1024xf32>
    tpu.vector_store %arg5[%c0_10, %c0_11], %12 {strides = array<i32>} : memref<16x1024xf32, #tpu.memory_space<vmem>>, vector<16x1024xf32>,
    return
  }
  func.func @transform_0(%arg0: i32) -> (i32, i32) {
    %c0_i32 = arith.constant 0 : i32
    %c0_i32_0 = arith.constant 0 : i32
    return %arg0, %c0_i32 : i32, i32
  }
  func.func @transform_1(%arg0: i32) -> (i32, i32) {
    %c0_i32 = arith.constant 0 : i32
    %c0_i32_0 = arith.constant 0 : i32
    %c0_i32_1 = arith.constant 0 : i32
    return %c0_i32, %c0_i32_0 : i32, i32
  }
  func.func @transform_2(%arg0: i32) -> (i32, i32) {
    %c0_i32 = arith.constant 0 : i32
    %c0_i32_0 = arith.constant 0 : i32
    %c0_i32_1 = arith.constant 0 : i32
    return %c0_i32, %c0_i32_0 : i32, i32
  }
  func.func @transform_3(%arg0: i32) -> (i32, i32) {
    %c0_i32 = arith.constant 0 : i32
    %c0_i32_0 = arith.constant 0 : i32
    %c0_i32_1 = arith.constant 0 : i32
    return %c0_i32, %c0_i32_0 : i32, i32
  }
  func.func @transform_4(%arg0: i32) -> (i32, i32) {
    %c0_i32 = arith.constant 0 : i32
    %c0_i32_0 = arith.constant 0 : i32
    return %arg0, %c0_i32 : i32, i32
  }
}

</mosaic_0001>

<llo_original>
// kernel: deconvolution_forward.1
$region0: #{deconvolution_forward.1}
  #allocation0 [shape = 'u32[]', space=smem, size = 0x4, offset = 0x4, fixed_abs, tag = 'smem constant byte address 0x4 - core index']
  #allocation1 [shape = 'u32[144,128]{1,0:T(1,128)}', space=vmem, size = 0x12000, scoped, tag = 'internal scratch']
  %s0 = inlined_call_operand.vmem [shape: f32[16,256], index: 0, kind: input, shape index: {}]
  %s1 = inlined_call_operand.vmem [shape: f32[16,16], index: 1, kind: input, shape index: {}]
  %s2 = inlined_call_operand.vmem [shape: f32[16,3], index: 2, kind: input, shape index: {}]
  %s3 = inlined_call_operand.vmem [shape: f32[256,1024], index: 3, kind: input, shape index: {}]
  %s4 = inlined_call_operand.vmem [shape: f32[16,1024], index: 4, kind: output, shape index: {}]
  %s5 = sld [smem:[#allocation0]]
  $region26: #{deconvolution_forward.1} parent=0
    _
  %s7 = ssub.s32 1, %s5
  %s8 = scalar_select 0, %s7, %s5
  // Predicated region
  $region2: #{deconvolution_forward.1} parent=0 // pred_check
    _
  $region3: #{deconvolution_forward.1} parent=0 // pred_check_branch
    %10 = sbr.rel (0) target = $region5
  $region4: #{deconvolution_forward.1} parent=0 // pred_region
    _
  $region5: #{deconvolution_forward.1} parent=0 // pred_fallthru
    _
  // Predicated region
  $region6: #{deconvolution_forward.1} parent=0 // pred_check
    _
  $region7: #{deconvolution_forward.1} parent=0 // pred_check_branch
    %12 = sbr.rel (0) target = $region9
  $region8: #{deconvolution_forward.1} parent=0 // pred_region
    _
  $region9: #{deconvolution_forward.1} parent=0 // pred_fallthru
    _
  // Predicated region
  $region10: #{deconvolution_forward.1} parent=0 // pred_check
    _
  $region11: #{deconvolution_forward.1} parent=0 // pred_check_branch
    %14 = sbr.rel (0) target = $region13
  $region12: #{deconvolution_forward.1} parent=0 // pred_region
    _
  $region13: #{deconvolution_forward.1} parent=0 // pred_fallthru
    _
  // Predicated region
  $region14: #{deconvolution_forward.1} parent=0 // pred_check
    _
  $region15: #{deconvolution_forward.1} parent=0 // pred_check_branch
    %16 = sbr.rel (0) target = $region17
  $region16: #{deconvolution_forward.1} parent=0 // pred_region
    _
  $region17: #{deconvolution_forward.1} parent=0 // pred_fallthru
    _
  %v17 = vld [vmem:[%s1] sm:$0xff]
  %v18 = vld [vmem:[%s1 + $0x8] sm:$0xff]
  %v19 = vld [vmem:[%s0] sm:$0xff]
  %v20 = vld [vmem:[%s0 + $0x8] sm:$0xff]
  %v21 = vld [vmem:[%s0 + $0x10] sm:$0xff]
  %v22 = vld [vmem:[%s0 + $0x18] sm:$0xff]
  %v23 = vld [vmem:[%s2] sm:$0xff]
  %v24 = vld [vmem:[%s2 + $0x8] sm:$0xff]
  %26 = vset.pattern.permute.xlu0 0
  %27 = vperm.xlu0 %26, %v23
  %v28 = vpop.permute.xlu0 %27
  %31 = vset.pattern.permute.xlu0 0
  %32 = vperm.xlu0 %31, %v24
  %v33 = vpop.permute.xlu0 %32
  %vm35 = vcmask 130048
  %v37 = vsel %vm35, %v17, 0
  %v40 = vsel %vm35, %v18, 0
  %42 = vmatprep.subr.mxu0 %v20
  %43 = vmatpush1.msra.mxu0 %v19
  %44 = vmatprep.subr.mxu0 %v22
  %45 = vmatpush1.msra.mxu0 %v21
  %46 = vmatprep.subr.mxu0 0.0
  %47 = vmatpush1.msra.mxu0 0.0
  %48 = vmatprep.subr.mxu0 0.0
  %49 = vmatpush1.msra.mxu0 0.0
  %50 = vmatprep.subr.mxu0 0.0
  %51 = vmatpush1.msra.mxu0 0.0
  %52 = vmatprep.subr.mxu0 0.0
  %53 = vmatpush1.msra.mxu0 0.0
  %54 = vmatprep.subr.mxu0 0.0
  %55 = vmatpush1.msra.mxu0 0.0
  %56 = vmatprep.subr.mxu0 0.0
  %57 = vmatpush1.msra.mxu0 0.0
  %58 = vmatprep.subr.mxu0 0.0
  %59 = vmatpush1.msra.mxu0 0.0
  %60 = vmatprep.subr.mxu0 0.0
  %61 = vmatpush1.msra.mxu0 0.0
  %62 = vmatprep.subr.mxu0 0.0
  %63 = vmatpush1.msra.mxu0 0.0
  %64 = vmatprep.subr.mxu0 0.0
  %65 = vmatpush1.msra.mxu0 0.0
  %66 = vmatprep.subr.mxu0 0.0
  %67 = vmatpush1.msra.mxu0 0.0
  %68 = vmatprep.subr.mxu0 0.0
  %69 = vmatpush1.msra.mxu0 0.0
  %70 = vmatprep.subr.mxu0 0.0
  %71 = vmatpush1.msra.mxu0 0.0
  %72 = vmatprep.subr.mxu0 0.0
  %73 = vmatpush1.msra.mxu0 0.0
  %74 = vmatprep.subr.mxu0 0.0
  %75 = vmatpush1.msra.mxu0 0.0
  %76 = vmatprep.subr.mxu0 0.0
  %77 = vmatpush1.msra.mxu0 0.0
  %78 = vmatprep.subr.mxu0 0.0
  %79 = vmatpush1.msra.mxu0 0.0
  %80 = vmatprep.subr.mxu0 0.0
  %81 = vmatpush1.msra.mxu0 0.0
  %82 = vmatprep.subr.mxu0 0.0
  %83 = vmatpush1.msra.mxu0 0.0
  %84 = vmatprep.subr.mxu0 0.0
  %85 = vmatpush1.msra.mxu0 0.0
  %86 = vmatprep.subr.mxu0 0.0
  %87 = vmatpush1.msra.mxu0 0.0
  %88 = vmatprep.subr.mxu0 0.0
  %89 = vmatpush1.msra.mxu0 0.0
  %90 = vmatprep.subr.mxu0 0.0
  %91 = vmatpush1.msra.mxu0 0.0
  %92 = vmatprep.subr.mxu0 0.0
  %93 = vmatpush1.msra.mxu0 0.0
  %94 = vmatprep.subr.mxu0 0.0
  %95 = vmatpush1.msra.mxu0 0.0
  %96 = vmatprep.subr.mxu0 0.0
  %97 = vmatpush1.msra.mxu0 0.0
  %98 = vmatprep.subr.mxu0 0.0
  %99 = vmatpush1.msra.mxu0 0.0
  %100 = vmatprep.subr.mxu0 0.0
  %101 = vmatpush1.msra.mxu0 0.0
  %102 = vmatprep.subr.mxu0 0.0
  %103 = vmatpush1.msra.mxu0 0.0
  %104 = vmatprep.subr.mxu0 0.0
  %105 = vmatpush1.msra.mxu0 0.0
  %106 = vmatprep.mubr.f32.mxu0 0.0
  %107 = vmatmul.mubr.f32.gmra.mrb[0].mxu0 %v37
  %v108 = vpop.f32.mrb[0].mxu0
  %v109 = vadd.f32 %v28, %v108
  %v110 = vpop.f32.mrb[0].mxu0
  %v111 = vadd.f32 %v28, %v110
  %112 = vmatprep.mubr.f32.mxu0 0.0
  %113 = vmatmul.mubr.f32.gmra.mrb[0].mxu0 %v40
  %v114 = vpop.f32.mrb[0].mxu0
  %v115 = vadd.f32 %v33, %v114
  %v116 = vpop.f32.mrb[0].mxu0
  %v117 = vadd.f32 %v33, %v116
  %118 = vdwg.mxu0
  %v119 = vmax.f32 %v109, 0.0
  %v120 = vmax.f32 %v111, 0.0
  %v121 = vmax.f32 %v115, 0.0
  %v122 = vmax.f32 %v117, 0.0
  %123 = vset.pattern.permute.xlu0 2
  %124 = vperm.xlu0 %123, %v23
  %v125 = vpop.permute.xlu0 %124
  %127 = vset.pattern.permute.xlu0 2
  %128 = vperm.xlu0 %127, %v24
  %v129 = vpop.permute.xlu0 %128
  %v131 = vadd.f32 %v119, %v125
  %v132 = vadd.f32 %v120, %v125
  %v133 = vadd.f32 %v121, %v129
  %v134 = vadd.f32 %v122, %v129
  %v135 = vld [vmem:[%s3] sm:$0xff]
  %v136 = vld [vmem:[%s3 + $0x8] sm:$0xff]
  %v137 = vld [vmem:[%s3 + $0x10] sm:$0xff]
  %v138 = vld [vmem:[%s3 + $0x18] sm:$0xff]
  %v139 = vld [vmem:[%s3 + $0x20] sm:$0xff]
  %v140 = vld [vmem:[%s3 + $0x28] sm:$0xff]
  %v141 = vld [vmem:[%s3 + $0x30] sm:$0xff]
  %v142 = vld [vmem:[%s3 + $0x38] sm:$0xff]
  %v143 = vld [vmem:[%s3 + $0x40] sm:$0xff]
  %v144 = vld [vmem:[%s3 + $0x48] sm:$0xff]
  %v145 = vld [vmem:[%s3 + $0x50] sm:$0xff]
  %v146 = vld [vmem:[%s3 + $0x58] sm:$0xff]
  %v147 = vld [vmem:[%s3 + $0x60] sm:$0xff]
  %v148 = vld [vmem:[%s3 + $0x68] sm:$0xff]
  %v149 = vld [vmem:[%s3 + $0x70] sm:$0xff]
  %v150 = vld [vmem:[%s3 + $0x78] sm:$0xff]
  %v151 = vld [vmem:[%s3 + $0x80] sm:$0xff]
  %v152 = vld [vmem:[%s3 + $0x88] sm:$0xff]
  %v153 = vld [vmem:[%s3 + $0x90] sm:$0xff]
  %v154 = vld [vmem:[%s3 + $0x98] sm:$0xff]
  %v155 = vld [vmem:[%s3 + $0xa0] sm:$0xff]
  %v156 = vld [vmem:[%s3 + $0xa8] sm:$0xff]
  %v157 = vld [vmem:[%s3 + $0xb0] sm:$0xff]
  %v158 = vld [vmem:[%s3 + $0xb8] sm:$0xff]
  %v159 = vld [vmem:[%s3 + $0xc0] sm:$0xff]
  %v160 = vld [vmem:[%s3 + $0xc8] sm:$0xff]
  %v161 = vld [vmem:[%s3 + $0xd0] sm:$0xff]
  %v162 = vld [vmem:[%s3 + $0xd8] sm:$0xff]
  %v163 = vld [vmem:[%s3 + $0xe0] sm:$0xff]
  %v164 = vld [vmem:[%s3 + $0xe8] sm:$0xff]
  %v165 = vld [vmem:[%s3 + $0xf0] sm:$0xff]
  %v166 = vld [vmem:[%s3 + $0xf8] sm:$0xff]
  %v167 = vld [vmem:[%s3 + $0x100] sm:$0xff]
  %v168 = vld [vmem:[%s3 + $0x108] sm:$0xff]
  %v169 = vld [vmem:[%s3 + $0x110] sm:$0xff]
  %v170 = vld [vmem:[%s3 + $0x118] sm:$0xff]
  %v171 = vld [vmem:[%s3 + $0x120] sm:$0xff]
  %v172 = vld [vmem:[%s3 + $0x128] sm:$0xff]
  %v173 = vld [vmem:[%s3 + $0x130] sm:$0xff]
  %v174 = vld [vmem:[%s3 + $0x138] sm:$0xff]
  %v175 = vld [vmem:[%s3 + $0x140] sm:$0xff]
  %v176 = vld [vmem:[%s3 + $0x148] sm:$0xff]
  %v177 = vld [vmem:[%s3 + $0x150] sm:$0xff]
  %v178 = vld [vmem:[%s3 + $0x158] sm:$0xff]
  %v179 = vld [vmem:[%s3 + $0x160] sm:$0xff]
  %v180 = vld [vmem:[%s3 + $0x168] sm:$0xff]
  %v181 = vld [vmem:[%s3 + $0x170] sm:$0xff]
  %v182 = vld [vmem:[%s3 + $0x178] sm:$0xff]
  %v183 = vld [vmem:[%s3 + $0x180] sm:$0xff]
  %v184 = vld [vmem:[%s3 + $0x188] sm:$0xff]
  %v185 = vld [vmem:[%s3 + $0x190] sm:$0xff]
  %v186 = vld [vmem:[%s3 + $0x198] sm:$0xff]
  %v187 = vld [vmem:[%s3 + $0x1a0] sm:$0xff]
  %v188 = vld [vmem:[%s3 + $0x1a8] sm:$0xff]
  %v189 = vld [vmem:[%s3 + $0x1b0] sm:$0xff]
  %v190 = vld [vmem:[%s3 + $0x1b8] sm:$0xff]
  %v191 = vld [vmem:[%s3 + $0x1c0] sm:$0xff]
  %v192 = vld [vmem:[%s3 + $0x1c8] sm:$0xff]
  %v193 = vld [vmem:[%s3 + $0x1d0] sm:$0xff]
  %v194 = vld [vmem:[%s3 + $0x1d8] sm:$0xff]
  %v195 = vld [vmem:[%s3 + $0x1e0] sm:$0xff]
  %v196 = vld [vmem:[%s3 + $0x1e8] sm:$0xff]
  %v197 = vld [vmem:[%s3 + $0x1f0] sm:$0xff]
  %v198 = vld [vmem:[%s3 + $0x1f8] sm:$0xff]
  %v199 = vld [vmem:[%s3 + $0x200] sm:$0xff]
  %v200 = vld [vmem:[%s3 + $0x208] sm:$0xff]
  %v201 = vld [vmem:[%s3 + $0x210] sm:$0xff]
  %v202 = vld [vmem:[%s3 + $0x218] sm:$0xff]
  %v203 = vld [vmem:[%s3 + $0x220] sm:$0xff]
  %v204 = vld [vmem:[%s3 + $0x228] sm:$0xff]
  %v205 = vld [vmem:[%s3 + $0x230] sm:$0xff]
  %v206 = vld [vmem:[%s3 + $0x238] sm:$0xff]
  %v207 = vld [vmem:[%s3 + $0x240] sm:$0xff]
  %v208 = vld [vmem:[%s3 + $0x248] sm:$0xff]
  %v209 = vld [vmem:[%s3 + $0x250] sm:$0xff]
  %v210 = vld [vmem:[%s3 + $0x258] sm:$0xff]
  %v211 = vld [vmem:[%s3 + $0x260] sm:$0xff]
  %v212 = vld [vmem:[%s3 + $0x268] sm:$0xff]
  %v213 = vld [vmem:[%s3 + $0x270] sm:$0xff]
  %v214 = vld [vmem:[%s3 + $0x278] sm:$0xff]
  %v215 = vld [vmem:[%s3 + $0x280] sm:$0xff]
  %v216 = vld [vmem:[%s3 + $0x288] sm:$0xff]
  %v217 = vld [vmem:[%s3 + $0x290] sm:$0xff]
  %v218 = vld [vmem:[%s3 + $0x298] sm:$0xff]
  %v219 = vld [vmem:[%s3 + $0x2a0] sm:$0xff]
  %v220 = vld [vmem:[%s3 + $0x2a8] sm:$0xff]
  %v221 = vld [vmem:[%s3 + $0x2b0] sm:$0xff]
  %v222 = vld [vmem:[%s3 + $0x2b8] sm:$0xff]
  %v223 = vld [vmem:[%s3 + $0x2c0] sm:$0xff]
  %v224 = vld [vmem:[%s3 + $0x2c8] sm:$0xff]
  %v225 = vld [vmem:[%s3 + $0x2d0] sm:$0xff]
  %v226 = vld [vmem:[%s3 + $0x2d8] sm:$0xff]
  %v227 = vld [vmem:[%s3 + $0x2e0] sm:$0xff]
  %v228 = vld [vmem:[%s3 + $0x2e8] sm:$0xff]
  %v229 = vld [vmem:[%s3 + $0x2f0] sm:$0xff]
  %v230 = vld [vmem:[%s3 + $0x2f8] sm:$0xff]
  %v231 = vld [vmem:[%s3 + $0x300] sm:$0xff]
  %v232 = vld [vmem:[%s3 + $0x308] sm:$0xff]
  %v233 = vld [vmem:[%s3 + $0x310] sm:$0xff]
  %v234 = vld [vmem:[%s3 + $0x318] sm:$0xff]
  %v235 = vld [vmem:[%s3 + $0x320] sm:$0xff]
  %v236 = vld [vmem:[%s3 + $0x328] sm:$0xff]
  %v237 = vld [vmem:[%s3 + $0x330] sm:$0xff]
  %v238 = vld [vmem:[%s3 + $0x338] sm:$0xff]
  %v239 = vld [vmem:[%s3 + $0x340] sm:$0xff]
  %v240 = vld [vmem:[%s3 + $0x348] sm:$0xff]
  %v241 = vld [vmem:[%s3 + $0x350] sm:$0xff]
  %v242 = vld [vmem:[%s3 + $0x358] sm:$0xff]
  %v243 = vld [vmem:[%s3 + $0x360] sm:$0xff]
  %v244 = vld [vmem:[%s3 + $0x368] sm:$0xff]
  %v245 = vld [vmem:[%s3 + $0x370] sm:$0xff]
  %v246 = vld [vmem:[%s3 + $0x378] sm:$0xff]
  %v247 = vld [vmem:[%s3 + $0x380] sm:$0xff]
  %v248 = vld [vmem:[%s3 + $0x388] sm:$0xff]
  %v249 = vld [vmem:[%s3 + $0x390] sm:$0xff]
  %v250 = vld [vmem:[%s3 + $0x398] sm:$0xff]
  %v251 = vld [vmem:[%s3 + $0x3a0] sm:$0xff]
  %v252 = vld [vmem:[%s3 + $0x3a8] sm:$0xff]
  %v253 = vld [vmem:[%s3 + $0x3b0] sm:$0xff]
  %v254 = vld [vmem:[%s3 + $0x3b8] sm:$0xff]
  %v255 = vld [vmem:[%s3 + $0x3c0] sm:$0xff]
  %v256 = vld [vmem:[%s3 + $0x3c8] sm:$0xff]
  %v257 = vld [vmem:[%s3 + $0x3d0] sm:$0xff]
  %v258 = vld [vmem:[%s3 + $0x3d8] sm:$0xff]
  %v259 = vld [vmem:[%s3 + $0x3e0] sm:$0xff]
  %v260 = vld [vmem:[%s3 + $0x3e8] sm:$0xff]
  %v261 = vld [vmem:[%s3 + $0x3f0] sm:$0xff]
  %v262 = vld [vmem:[%s3 + $0x3f8] sm:$0xff]
  %v263 = vld [vmem:[%s3 + $0x400] sm:$0xff]
  %v264 = vld [vmem:[%s3 + $0x408] sm:$0xff]
  %v265 = vld [vmem:[%s3 + $0x410] sm:$0xff]
  %v266 = vld [vmem:[%s3 + $0x418] sm:$0xff]
  %v267 = vld [vmem:[%s3 + $0x420] sm:$0xff]
  %v268 = vld [vmem:[%s3 + $0x428] sm:$0xff]
  %v269 = vld [vmem:[%s3 + $0x430] sm:$0xff]
  %v270 = vld [vmem:[%s3 + $0x438] sm:$0xff]
  %v271 = vld [vmem:[%s3 + $0x440] sm:$0xff]
  %v272 = vld [vmem:[%s3 + $0x448] sm:$0xff]
  %v273 = vld [vmem:[%s3 + $0x450] sm:$0xff]
  %v274 = vld [vmem:[%s3 + $0x458] sm:$0xff]
  %v275 = vld [vmem:[%s3 + $0x460] sm:$0xff]
  %v276 = vld [vmem:[%s3 + $0x468] sm:$0xff]
  %v277 = vld [vmem:[%s3 + $0x470] sm:$0xff]
  %v278 = vld [vmem:[%s3 + $0x478] sm:$0xff]
  %v279 = vld [vmem:[%s3 + $0x480] sm:$0xff]
  %v280 = vld [vmem:[%s3 + $0x488] sm:$0xff]
  %v281 = vld [vmem:[%s3 + $0x490] sm:$0xff]
  %v282 = vld [vmem:[%s3 + $0x498] sm:$0xff]
  %v283 = vld [vmem:[%s3 + $0x4a0] sm:$0xff]
  %v284 = vld [vmem:[%s3 + $0x4a8] sm:$0xff]
  %v285 = vld [vmem:[%s3 + $0x4b0] sm:$0xff]
  %v286 = vld [vmem:[%s3 + $0x4b8] sm:$0xff]
  %v287 = vld [vmem:[%s3 + $0x4c0] sm:$0xff]
  %v288 = vld [vmem:[%s3 + $0x4c8] sm:$0xff]
  %v289 = vld [vmem:[%s3 + $0x4d0] sm:$0xff]
  %v290 = vld [vmem:[%s3 + $0x4d8] sm:$0xff]
  %v291 = vld [vmem:[%s3 + $0x4e0] sm:$0xff]
  %v292 = vld [vmem:[%s3 + $0x4e8] sm:$0xff]
  %v293 = vld [vmem:[%s3 + $0x4f0] sm:$0xff]
  %v294 = vld [vmem:[%s3 + $0x4f8] sm:$0xff]
  %v295 = vld [vmem:[%s3 + $0x500] sm:$0xff]
  %v296 = vld [vmem:[%s3 + $0x508] sm:$0xff]
  %v297 = vld [vmem:[%s3 + $0x510] sm:$0xff]
  %v298 = vld [vmem:[%s3 + $0x518] sm:$0xff]
  %v299 = vld [vmem:[%s3 + $0x520] sm:$0xff]
  %v300 = vld [vmem:[%s3 + $0x528] sm:$0xff]
  %v301 = vld [vmem:[%s3 + $0x530] sm:$0xff]
  %v302 = vld [vmem:[%s3 + $0x538] sm:$0xff]
  %v303 = vld [vmem:[%s3 + $0x540] sm:$0xff]
  %v304 = vld [vmem:[%s3 + $0x548] sm:$0xff]
  %v305 = vld [vmem:[%s3 + $0x550] sm:$0xff]
  %v306 = vld [vmem:[%s3 + $0x558] sm:$0xff]
  %v307 = vld [vmem:[%s3 + $0x560] sm:$0xff]
  %v308 = vld [vmem:[%s3 + $0x568] sm:$0xff]
  %v309 = vld [vmem:[%s3 + $0x570] sm:$0xff]
  %v310 = vld [vmem:[%s3 + $0x578] sm:$0xff]
  %v311 = vld [vmem:[%s3 + $0x580] sm:$0xff]
  %v312 = vld [vmem:[%s3 + $0x588] sm:$0xff]
  %v313 = vld [vmem:[%s3 + $0x590] sm:$0xff]
  %v314 = vld [vmem:[%s3 + $0x598] sm:$0xff]
  %v315 = vld [vmem:[%s3 + $0x5a0] sm:$0xff]
  %v316 = vld [vmem:[%s3 + $0x5a8] sm:$0xff]
  %v317 = vld [vmem:[%s3 + $0x5b0] sm:$0xff]
  %v318 = vld [vmem:[%s3 + $0x5b8] sm:$0xff]
  %v319 = vld [vmem:[%s3 + $0x5c0] sm:$0xff]
  %v320 = vld [vmem:[%s3 + $0x5c8] sm:$0xff]
  %v321 = vld [vmem:[%s3 + $0x5d0] sm:$0xff]
  %v322 = vld [vmem:[%s3 + $0x5d8] sm:$0xff]
  %v323 = vld [vmem:[%s3 + $0x5e0] sm:$0xff]
  %v324 = vld [vmem:[%s3 + $0x5e8] sm:$0xff]
  %v325 = vld [vmem:[%s3 + $0x5f0] sm:$0xff]
  %v326 = vld [vmem:[%s3 + $0x5f8] sm:$0xff]
  %v327 = vld [vmem:[%s3 + $0x600] sm:$0xff]
  %v328 = vld [vmem:[%s3 + $0x608] sm:$0xff]
  %v329 = vld [vmem:[%s3 + $0x610] sm:$0xff]
  %v330 = vld [vmem:[%s3 + $0x618] sm:$0xff]
  %v331 = vld [vmem:[%s3 + $0x620] sm:$0xff]
  %v332 = vld [vmem:[%s3 + $0x628] sm:$0xff]
  %v333 = vld [vmem:[%s3 + $0x630] sm:$0xff]
  %v334 = vld [vmem:[%s3 + $0x638] sm:$0xff]
  %v335 = vld [vmem:[%s3 + $0x640] sm:$0xff]
  %v336 = vld [vmem:[%s3 + $0x648] sm:$0xff]
  %v337 = vld [vmem:[%s3 + $0x650] sm:$0xff]
  %v338 = vld [vmem:[%s3 + $0x658] sm:$0xff]
  %v339 = vld [vmem:[%s3 + $0x660] sm:$0xff]
  %v340 = vld [vmem:[%s3 + $0x668] sm:$0xff]
  %v341 = vld [vmem:[%s3 + $0x670] sm:$0xff]
  %v342 = vld [vmem:[%s3 + $0x678] sm:$0xff]
  %v343 = vld [vmem:[%s3 + $0x680] sm:$0xff]
  %v344 = vld [vmem:[%s3 + $0x688] sm:$0xff]
  %v345 = vld [vmem:[%s3 + $0x690] sm:$0xff]
  %v346 = vld [vmem:[%s3 + $0x698] sm:$0xff]
  %v347 = vld [vmem:[%s3 + $0x6a0] sm:$0xff]
  %v348 = vld [vmem:[%s3 + $0x6a8] sm:$0xff]
  %v349 = vld [vmem:[%s3 + $0x6b0] sm:$0xff]
  %v350 = vld [vmem:[%s3 + $0x6b8] sm:$0xff]
  %v351 = vld [vmem:[%s3 + $0x6c0] sm:$0xff]
  %v352 = vld [vmem:[%s3 + $0x6c8] sm:$0xff]
  %v353 = vld [vmem:[%s3 + $0x6d0] sm:$0xff]
  %v354 = vld [vmem:[%s3 + $0x6d8] sm:$0xff]
  %v355 = vld [vmem:[%s3 + $0x6e0] sm:$0xff]
  %v356 = vld [vmem:[%s3 + $0x6e8] sm:$0xff]
  %v357 = vld [vmem:[%s3 + $0x6f0] sm:$0xff]
  %v358 = vld [vmem:[%s3 + $0x6f8] sm:$0xff]
  %v359 = vld [vmem:[%s3 + $0x700] sm:$0xff]
  %v360 = vld [vmem:[%s3 + $0x708] sm:$0xff]
  %v361 = vld [vmem:[%s3 + $0x710] sm:$0xff]
  %v362 = vld [vmem:[%s3 + $0x718] sm:$0xff]
  %v363 = vld [vmem:[%s3 + $0x720] sm:$0xff]
  %v364 = vld [vmem:[%s3 + $0x728] sm:$0xff]
  %v365 = vld [vmem:[%s3 + $0x730] sm:$0xff]
  %v366 = vld [vmem:[%s3 + $0x738] sm:$0xff]
  %v367 = vld [vmem:[%s3 + $0x740] sm:$0xff]
  %v368 = vld [vmem:[%s3 + $0x748] sm:$0xff]
  %v369 = vld [vmem:[%s3 + $0x750] sm:$0xff]
  %v370 = vld [vmem:[%s3 + $0x758] sm:$0xff]
  %v371 = vld [vmem:[%s3 + $0x760] sm:$0xff]
  %v372 = vld [vmem:[%s3 + $0x768] sm:$0xff]
  %v373 = vld [vmem:[%s3 + $0x770] sm:$0xff]
  %v374 = vld [vmem:[%s3 + $0x778] sm:$0xff]
  %v375 = vld [vmem:[%s3 + $0x780] sm:$0xff]
  %v376 = vld [vmem:[%s3 + $0x788] sm:$0xff]
  %v377 = vld [vmem:[%s3 + $0x790] sm:$0xff]
  %v378 = vld [vmem:[%s3 + $0x798] sm:$0xff]
  %v379 = vld [vmem:[%s3 + $0x7a0] sm:$0xff]
  %v380 = vld [vmem:[%s3 + $0x7a8] sm:$0xff]
  %v381 = vld [vmem:[%s3 + $0x7b0] sm:$0xff]
  %v382 = vld [vmem:[%s3 + $0x7b8] sm:$0xff]
  %v383 = vld [vmem:[%s3 + $0x7c0] sm:$0xff]
  %v384 = vld [vmem:[%s3 + $0x7c8] sm:$0xff]
  %v385 = vld [vmem:[%s3 + $0x7d0] sm:$0xff]
  %v386 = vld [vmem:[%s3 + $0x7d8] sm:$0xff]
  %v387 = vld [vmem:[%s3 + $0x7e0] sm:$0xff]
  %v388 = vld [vmem:[%s3 + $0x7e8] sm:$0xff]
  %v389 = vld [vmem:[%s3 + $0x7f0] sm:$0xff]
  %v390 = vld [vmem:[%s3 + $0x7f8] sm:$0xff]
  %391 = vmatprep.subr.mxu0 %v136
  %392 = vmatpush1.msra.mxu0 %v135
  %393 = vmatprep.subr.mxu0 %v144
  %394 = vmatpush1.msra.mxu0 %v143
  %395 = vmatprep.subr.mxu0 %v152
  %396 = vmatpush1.msra.mxu0 %v151
  %397 = vmatprep.subr.mxu0 %v160
  %398 = vmatpush1.msra.mxu0 %v159
  %399 = vmatprep.subr.mxu0 %v168
  %400 = vmatpush1.msra.mxu0 %v167
  %401 = vmatprep.subr.mxu0 %v176
  %402 = vmatpush1.msra.mxu0 %v175
  %403 = vmatprep.subr.mxu0 %v184
  %404 = vmatpush1.msra.mxu0 %v183
  %405 = vmatprep.subr.mxu0 %v192
  %406 = vmatpush1.msra.mxu0 %v191
  %407 = vmatprep.subr.mxu0 %v200
  %408 = vmatpush1.msra.mxu0 %v199
  %409 = vmatprep.subr.mxu0 %v208
  %410 = vmatpush1.msra.mxu0 %v207
  %411 = vmatprep.subr.mxu0 %v216
  %412 = vmatpush1.msra.mxu0 %v215
  %413 = vmatprep.subr.mxu0 %v224
  %414 = vmatpush1.msra.mxu0 %v223
  %415 = vmatprep.subr.mxu0 %v232
  %416 = vmatpush1.msra.mxu0 %v231
  %417 = vmatprep.subr.mxu0 %v240
  %418 = vmatpush1.msra.mxu0 %v239
  %419 = vmatprep.subr.mxu0 %v248
  %420 = vmatpush1.msra.mxu0 %v247
  %421 = vmatprep.subr.mxu0 %v256
  %422 = vmatpush1.msra.mxu0 %v255
  %423 = vmatprep.subr.mxu0 %v264
  %424 = vmatpush1.msra.mxu0 %v263
  %425 = vmatprep.subr.mxu0 %v272
  %426 = vmatpush1.msra.mxu0 %v271
  %427 = vmatprep.subr.mxu0 %v280
  %428 = vmatpush1.msra.mxu0 %v279
  %429 = vmatprep.subr.mxu0 %v288
  %430 = vmatpush1.msra.mxu0 %v287
  %431 = vmatprep.subr.mxu0 %v296
  %432 = vmatpush1.msra.mxu0 %v295
  %433 = vmatprep.subr.mxu0 %v304
  %434 = vmatpush1.msra.mxu0 %v303
  %435 = vmatprep.subr.mxu0 %v312
  %436 = vmatpush1.msra.mxu0 %v311
  %437 = vmatprep.subr.mxu0 %v320
  %438 = vmatpush1.msra.mxu0 %v319
  %439 = vmatprep.subr.mxu0 %v328
  %440 = vmatpush1.msra.mxu0 %v327
  %441 = vmatprep.subr.mxu0 %v336
  %442 = vmatpush1.msra.mxu0 %v335
  %443 = vmatprep.subr.mxu0 %v344
  %444 = vmatpush1.msra.mxu0 %v343
  %445 = vmatprep.subr.mxu0 %v352
  %446 = vmatpush1.msra.mxu0 %v351
  %447 = vmatprep.subr.mxu0 %v360
  %448 = vmatpush1.msra.mxu0 %v359
  %449 = vmatprep.subr.mxu0 %v368
  %450 = vmatpush1.msra.mxu0 %v367
  %451 = vmatprep.subr.mxu0 %v376
  %452 = vmatpush1.msra.mxu0 %v375
  %453 = vmatprep.subr.mxu0 %v384
  %454 = vmatpush1.msra.mxu0 %v383
  %455 = vmatprep.mubr.f32.mxu0 %v132
  %456 = vmatmul.mubr.f32.gmra.mrb[0].mxu0 %v131
  %v457 = vpop.f32.mrb[0].mxu0
  %v458 = vadd.f32 0.0, %v457
  %v459 = vpop.f32.mrb[0].mxu0
  %v460 = vadd.f32 0.0, %v459
  %461 = vmatprep.mubr.f32.mxu0 %v134
  %462 = vmatmul.mubr.f32.gmra.mrb[0].mxu0 %v133
  %v463 = vpop.f32.mrb[0].mxu0
  %v464 = vadd.f32 0.0, %v463
  %v465 = vpop.f32.mrb[0].mxu0
  %v466 = vadd.f32 0.0, %v465
  %467 = vdwg.mxu0
  %468 = vmatprep.subr.mxu0 %v138
  %469 = vmatpush1.msra.mxu0 %v137
  %470 = vmatprep.subr.mxu0 %v146
  %471 = vmatpush1.msra.mxu0 %v145
  %472 = vmatprep.subr.mxu0 %v154
  %473 = vmatpush1.msra.mxu0 %v153
  %474 = vmatprep.subr.mxu0 %v162
  %475 = vmatpush1.msra.mxu0 %v161
  %476 = vmatprep.subr.mxu0 %v170
  %477 = vmatpush1.msra.mxu0 %v169
  %478 = vmatprep.subr.mxu0 %v178
  %479 = vmatpush1.msra.mxu0 %v177
  %480 = vmatprep.subr.mxu0 %v186
  %481 = vmatpush1.msra.mxu0 %v185
  %482 = vmatprep.subr.mxu0 %v194
  %483 = vmatpush1.msra.mxu0 %v193
  %484 = vmatprep.subr.mxu0 %v202
  %485 = vmatpush1.msra.mxu0 %v201
  %486 = vmatprep.subr.mxu0 %v210
  %487 = vmatpush1.msra.mxu0 %v209
  %488 = vmatprep.subr.mxu0 %v218
  %489 = vmatpush1.msra.mxu0 %v217
  %490 = vmatprep.subr.mxu0 %v226
  %491 = vmatpush1.msra.mxu0 %v225
  %492 = vmatprep.subr.mxu0 %v234
  %493 = vmatpush1.msra.mxu0 %v233
  %494 = vmatprep.subr.mxu0 %v242
  %495 = vmatpush1.msra.mxu0 %v241
  %496 = vmatprep.subr.mxu0 %v250
  %497 = vmatpush1.msra.mxu0 %v249
  %498 = vmatprep.subr.mxu0 %v258
  %499 = vmatpush1.msra.mxu0 %v257
  %500 = vmatprep.subr.mxu0 %v266
  %501 = vmatpush1.msra.mxu0 %v265
  %502 = vmatprep.subr.mxu0 %v274
  %503 = vmatpush1.msra.mxu0 %v273
  %504 = vmatprep.subr.mxu0 %v282
  %505 = vmatpush1.msra.mxu0 %v281
  %506 = vmatprep.subr.mxu0 %v290
  %507 = vmatpush1.msra.mxu0 %v289
  %508 = vmatprep.subr.mxu0 %v298
  %509 = vmatpush1.msra.mxu0 %v297
  %510 = vmatprep.subr.mxu0 %v306
  %511 = vmatpush1.msra.mxu0 %v305
  %512 = vmatprep.subr.mxu0 %v314
  %513 = vmatpush1.msra.mxu0 %v313
  %514 = vmatprep.subr.mxu0 %v322
  %515 = vmatpush1.msra.mxu0 %v321
  %516 = vmatprep.subr.mxu0 %v330
  %517 = vmatpush1.msra.mxu0 %v329
  %518 = vmatprep.subr.mxu0 %v338
  %519 = vmatpush1.msra.mxu0 %v337
  %520 = vmatprep.subr.mxu0 %v346
  %521 = vmatpush1.msra.mxu0 %v345
  %522 = vmatprep.subr.mxu0 %v354
  %523 = vmatpush1.msra.mxu0 %v353
  %524 = vmatprep.subr.mxu0 %v362
  %525 = vmatpush1.msra.mxu0 %v361
  %526 = vmatprep.subr.mxu0 %v370
  %527 = vmatpush1.msra.mxu0 %v369
  %528 = vmatprep.subr.mxu0 %v378
  %529 = vmatpush1.msra.mxu0 %v377
  %530 = vmatprep.subr.mxu0 %v386
  %531 = vmatpush1.msra.mxu0 %v385
  %532 = vmatprep.mubr.f32.mxu0 %v132
  %533 = vmatmul.mubr.f32.gmra.mrb[0].mxu0 %v131
  %v534 = vpop.f32.mrb[0].mxu0
  %v535 = vadd.f32 0.0, %v534
  %v536 = vpop.f32.mrb[0].mxu0
  %v537 = vadd.f32 0.0, %v536
  %538 = vmatprep.mubr.f32.mxu0 %v134
  %539 = vmatmul.mubr.f32.gmra.mrb[0].mxu0 %v133
  %v540 = vpop.f32.mrb[0].mxu0
  %v541 = vadd.f32 0.0, %v540
  %v542 = vpop.f32.mrb[0].mxu0
  %v543 = vadd.f32 0.0, %v542
  %544 = vdwg.mxu0
  %545 = vmatprep.subr.mxu0 %v140
  %546 = vmatpush1.msra.mxu0 %v139
  %547 = vmatprep.subr.mxu0 %v148
  %548 = vmatpush1.msra.mxu0 %v147
  %549 = vmatprep.subr.mxu0 %v156
  %550 = vmatpush1.msra.mxu0 %v155
  %551 = vmatprep.subr.mxu0 %v164
  %552 = vmatpush1.msra.mxu0 %v163
  %553 = vmatprep.subr.mxu0 %v172
  %554 = vmatpush1.msra.mxu0 %v171
  %555 = vmatprep.subr.mxu0 %v180
  %556 = vmatpush1.msra.mxu0 %v179
  %557 = vmatprep.subr.mxu0 %v188
  %558 = vmatpush1.msra.mxu0 %v187
  %559 = vmatprep.subr.mxu0 %v196
  %560 = vmatpush1.msra.mxu0 %v195
  %561 = vmatprep.subr.mxu0 %v204
  %562 = vmatpush1.msra.mxu0 %v203
  %563 = vmatprep.subr.mxu0 %v212
  %564 = vmatpush1.msra.mxu0 %v211
  %565 = vmatprep.subr.mxu0 %v220
  %566 = vmatpush1.msra.mxu0 %v219
  %567 = vmatprep.subr.mxu0 %v228
  %568 = vmatpush1.msra.mxu0 %v227
  %569 = vmatprep.subr.mxu0 %v236
  %570 = vmatpush1.msra.mxu0 %v235
  %571 = vmatprep.subr.mxu0 %v244
  %572 = vmatpush1.msra.mxu0 %v243
  %573 = vmatprep.subr.mxu0 %v252
  %574 = vmatpush1.msra.mxu0 %v251
  %575 = vmatprep.subr.mxu0 %v260
  %576 = vmatpush1.msra.mxu0 %v259
  %577 = vmatprep.subr.mxu0 %v268
  %578 = vmatpush1.msra.mxu0 %v267
  %579 = vmatprep.subr.mxu0 %v276
  %580 = vmatpush1.msra.mxu0 %v275
  %581 = vmatprep.subr.mxu0 %v284
  %582 = vmatpush1.msra.mxu0 %v283
  %583 = vmatprep.subr.mxu0 %v292
  %584 = vmatpush1.msra.mxu0 %v291
  %585 = vmatprep.subr.mxu0 %v300
  %586 = vmatpush1.msra.mxu0 %v299
  %587 = vmatprep.subr.mxu0 %v308
  %588 = vmatpush1.msra.mxu0 %v307
  %589 = vmatprep.subr.mxu0 %v316
  %590 = vmatpush1.msra.mxu0 %v315
  %591 = vmatprep.subr.mxu0 %v324
  %592 = vmatpush1.msra.mxu0 %v323
  %593 = vmatprep.subr.mxu0 %v332
  %594 = vmatpush1.msra.mxu0 %v331
  %595 = vmatprep.subr.mxu0 %v340
  %596 = vmatpush1.msra.mxu0 %v339
  %597 = vmatprep.subr.mxu0 %v348
  %598 = vmatpush1.msra.mxu0 %v347
  %599 = vmatprep.subr.mxu0 %v356
  %600 = vmatpush1.msra.mxu0 %v355
  %601 = vmatprep.subr.mxu0 %v364
  %602 = vmatpush1.msra.mxu0 %v363
  %603 = vmatprep.subr.mxu0 %v372
  %604 = vmatpush1.msra.mxu0 %v371
  %605 = vmatprep.subr.mxu0 %v380
  %606 = vmatpush1.msra.mxu0 %v379
  %607 = vmatprep.subr.mxu0 %v388
  %608 = vmatpush1.msra.mxu0 %v387
  %609 = vmatprep.mubr.f32.mxu0 %v132
  %610 = vmatmul.mubr.f32.gmra.mrb[0].mxu0 %v131
  %v611 = vpop.f32.mrb[0].mxu0
  %v612 = vadd.f32 0.0, %v611
  %v613 = vpop.f32.mrb[0].mxu0
  %v614 = vadd.f32 0.0, %v613
  %615 = vmatprep.mubr.f32.mxu0 %v134
  %616 = vmatmul.mubr.f32.gmra.mrb[0].mxu0 %v133
  %v617 = vpop.f32.mrb[0].mxu0
  %v618 = vadd.f32 0.0, %v617
  %v619 = vpop.f32.mrb[0].mxu0
  %v620 = vadd.f32 0.0, %v619
  %621 = vdwg.mxu0
  %622 = vmatprep.subr.mxu0 %v142
  %623 = vmatpush1.msra.mxu0 %v141
  %624 = vmatprep.subr.mxu0 %v150
  %625 = vmatpush1.msra.mxu0 %v149
  %626 = vmatprep.subr.mxu0 %v158
  %627 = vmatpush1.msra.mxu0 %v157
  %628 = vmatprep.subr.mxu0 %v166
  %629 = vmatpush1.msra.mxu0 %v165
  %630 = vmatprep.subr.mxu0 %v174
  %631 = vmatpush1.msra.mxu0 %v173
  %632 = vmatprep.subr.mxu0 %v182
  %633 = vmatpush1.msra.mxu0 %v181
  %634 = vmatprep.subr.mxu0 %v190
  %635 = vmatpush1.msra.mxu0 %v189
  %636 = vmatprep.subr.mxu0 %v198
  %637 = vmatpush1.msra.mxu0 %v197
  %638 = vmatprep.subr.mxu0 %v206
  %639 = vmatpush1.msra.mxu0 %v205
  %640 = vmatprep.subr.mxu0 %v214
  %641 = vmatpush1.msra.mxu0 %v213
  %642 = vmatprep.subr.mxu0 %v222
  %643 = vmatpush1.msra.mxu0 %v221
  %644 = vmatprep.subr.mxu0 %v230
  %645 = vmatpush1.msra.mxu0 %v229
  %646 = vmatprep.subr.mxu0 %v238
  %647 = vmatpush1.msra.mxu0 %v237
  %648 = vmatprep.subr.mxu0 %v246
  %649 = vmatpush1.msra.mxu0 %v245
  %650 = vmatprep.subr.mxu0 %v254
  %651 = vmatpush1.msra.mxu0 %v253
  %652 = vmatprep.subr.mxu0 %v262
  %653 = vmatpush1.msra.mxu0 %v261
  %654 = vmatprep.subr.mxu0 %v270
  %655 = vmatpush1.msra.mxu0 %v269
  %656 = vmatprep.subr.mxu0 %v278
  %657 = vmatpush1.msra.mxu0 %v277
  %658 = vmatprep.subr.mxu0 %v286
  %659 = vmatpush1.msra.mxu0 %v285
  %660 = vmatprep.subr.mxu0 %v294
  %661 = vmatpush1.msra.mxu0 %v293
  %662 = vmatprep.subr.mxu0 %v302
  %663 = vmatpush1.msra.mxu0 %v301
  %664 = vmatprep.subr.mxu0 %v310
  %665 = vmatpush1.msra.mxu0 %v309
  %666 = vmatprep.subr.mxu0 %v318
  %667 = vmatpush1.msra.mxu0 %v317
  %668 = vmatprep.subr.mxu0 %v326
  %669 = vmatpush1.msra.mxu0 %v325
  %670 = vmatprep.subr.mxu0 %v334
  %671 = vmatpush1.msra.mxu0 %v333
  %672 = vmatprep.subr.mxu0 %v342
  %673 = vmatpush1.msra.mxu0 %v341
  %674 = vmatprep.subr.mxu0 %v350
  %675 = vmatpush1.msra.mxu0 %v349
  %676 = vmatprep.subr.mxu0 %v358
  %677 = vmatpush1.msra.mxu0 %v357
  %678 = vmatprep.subr.mxu0 %v366
  %679 = vmatpush1.msra.mxu0 %v365
  %680 = vmatprep.subr.mxu0 %v374
  %681 = vmatpush1.msra.mxu0 %v373
  %682 = vmatprep.subr.mxu0 %v382
  %683 = vmatpush1.msra.mxu0 %v381
  %684 = vmatprep.subr.mxu0 %v390
  %685 = vmatpush1.msra.mxu0 %v389
  %686 = vmatprep.mubr.f32.mxu0 %v132
  %687 = vmatmul.mubr.f32.gmra.mrb[0].mxu0 %v131
  %v688 = vpop.f32.mrb[0].mxu0
  %v689 = vadd.f32 0.0, %v688
  %v690 = vpop.f32.mrb[0].mxu0
  %v691 = vadd.f32 0.0, %v690
  %692 = vmatprep.mubr.f32.mxu0 %v134
  %693 = vmatmul.mubr.f32.gmra.mrb[0].mxu0 %v133
  %v694 = vpop.f32.mrb[0].mxu0
  %v695 = vadd.f32 0.0, %v694
  %v696 = vpop.f32.mrb[0].mxu0
  %v697 = vadd.f32 0.0, %v696
  %698 = vdwg.mxu0
  %699 = vst [vmem:[%s4] sm:$0xff] %v458
  %700 = vst [vmem:[%s4 + $0x8] sm:$0xff] %v460
  %701 = vst [vmem:[%s4 + $0x10] sm:$0xff] %v535
  %702 = vst [vmem:[%s4 + $0x18] sm:$0xff] %v537
  %703 = vst [vmem:[%s4 + $0x20] sm:$0xff] %v612
  %704 = vst [vmem:[%s4 + $0x28] sm:$0xff] %v614
  %705 = vst [vmem:[%s4 + $0x30] sm:$0xff] %v689
  %706 = vst [vmem:[%s4 + $0x38] sm:$0xff] %v691
  %707 = vst [vmem:[%s4 + $0x40] sm:$0xff] %v464
  %708 = vst [vmem:[%s4 + $0x48] sm:$0xff] %v466
  %709 = vst [vmem:[%s4 + $0x50] sm:$0xff] %v541
  %710 = vst [vmem:[%s4 + $0x58] sm:$0xff] %v543
  %711 = vst [vmem:[%s4 + $0x60] sm:$0xff] %v618
  %712 = vst [vmem:[%s4 + $0x68] sm:$0xff] %v620
  %713 = vst [vmem:[%s4 + $0x70] sm:$0xff] %v695
  %714 = vst [vmem:[%s4 + $0x78] sm:$0xff] %v697
  // Predicated region
  $region18: #{deconvolution_forward.1} parent=0 // pred_check
    _
  $region19: #{deconvolution_forward.1} parent=0 // pred_check_branch
    %716 = sbr.rel (0) target = $region21
  $region20: #{deconvolution_forward.1} parent=0 // pred_region
    _
  $region21: #{deconvolution_forward.1} parent=0 // pred_fallthru
    _
  // Predicated region
  $region22: #{deconvolution_forward.1} parent=0 // pred_check
    _
  $region23: #{deconvolution_forward.1} parent=0 // pred_check_branch
    %718 = sbr.rel (0) target = $region25
  $region24: #{deconvolution_forward.1} parent=0 // pred_region
    _
  $region25: #{deconvolution_forward.1} parent=0 // pred_fallthru
    _

</llo_original>
